<compile_context>
chip_gen: v7x
topology: tpu7x:2x2x1
jax: 0.10.0
libtpu: 0.0.40
codegen_flags: <defaults>
</compile_context>

<pallas_src>
import functools

import jax
import jax.numpy as jnp
from jax.experimental import pallas as pl
from jax.experimental.pallas import tpu as pltpu

SPLIT = 5                           # torch.split(input, 5, dim=-1)
NUM_CHUNKS = 3
N_IN = SPLIT * NUM_CHUNKS           # 15

DMA_TILE_ROWS = 16384               # rows per grid step, DMA path (~1 MB read/step)
VEC_TILE_ROWS = 8192                # rows per grid step, vector path (multiple of 8)
VEC_VMEM_LIMIT = 48 * 1024 * 1024   # explicit scoped-VMEM budget for the vector path


# ----------------------------------------------------------------------------
# Primary path: pure DMA offload (no vector-unit work, no VMEM staging).
# ----------------------------------------------------------------------------
def _split_dma_kernel(x_hbm, q_hbm, k_hbm, v_hbm, sems, *, rows, tile_rows):
    step = pl.program_id(0)
    # Clamp the last (ragged) tile so it overlaps the previous one instead of
    # running past the end of the arrays; overlapping rows are re-copied with
    # identical values (benign for a pure copy) and all DMA shapes stay static.
    row0 = jnp.minimum(step * tile_rows, rows - tile_rows)
    outs = (q_hbm, k_hbm, v_hbm)
    copies = []
    for c in range(NUM_CHUNKS):
        cp = pltpu.make_async_copy(
            x_hbm.at[pl.ds(row0, tile_rows), pl.ds(c * SPLIT, SPLIT)],
            outs[c].at[pl.ds(row0, tile_rows), :],
            sems.at[c],
        )
        cp.start()
        copies.append(cp)
    # Wait on every DMA before the grid step ends (review correctness note).
    for cp in copies:
        cp.wait()


def _split_rows_dma(x2):
    rows = x2.shape[0]
    tile_rows = min(rows, DMA_TILE_ROWS)
    grid = (pl.cdiv(rows, tile_rows),)
    out_shape = tuple(
        jax.ShapeDtypeStruct((rows, SPLIT), x2.dtype) for _ in range(NUM_CHUNKS))
    cost = pl.CostEstimate(
        flops=0, transcendentals=0,
        bytes_accessed=2 * rows * N_IN * x2.dtype.itemsize)
    kernel = functools.partial(_split_dma_kernel, rows=rows, tile_rows=tile_rows)
    return pl.pallas_call(
        kernel,
        out_shape=out_shape,
        grid=grid,
        in_specs=[pl.BlockSpec(memory_space=pl.ANY)],
        out_specs=tuple(pl.BlockSpec(memory_space=pl.ANY) for _ in range(NUM_CHUNKS)),
        scratch_shapes=[pltpu.SemaphoreType.DMA((NUM_CHUNKS,))],
        compiler_params=pltpu.CompilerParams(
            # Tiles overlap on the ragged edge, so keep steps ordered.
            dimension_semantics=("arbitrary",),
            has_side_effects=True),
        cost_estimate=cost,
    )(x2)


# ----------------------------------------------------------------------------
# Fallback path: known-good vector-copy pipeline (improved tiling/VMEM budget).
# ----------------------------------------------------------------------------
def _split_vec_kernel(x_ref, q_ref, k_ref, v_ref):
    x = x_ref[...]                       # one load of the (tile_rows, 15) tile
    q_ref[...] = x[:, 0 * SPLIT:1 * SPLIT]
    k_ref[...] = x[:, 1 * SPLIT:2 * SPLIT]
    v_ref[...] = x[:, 2 * SPLIT:3 * SPLIT]


def _split_rows_vec(x2):
    rows = x2.shape[0]
    # Full-extent block when small (exempt from the 8-row divisibility rule),
    # otherwise a multiple-of-8 tile; ragged row edges are masked by Pallas.
    tile_rows = rows if rows <= VEC_TILE_ROWS else VEC_TILE_ROWS
    grid = (pl.cdiv(rows, tile_rows),)
    out_shape = tuple(
        jax.ShapeDtypeStruct((rows, SPLIT), x2.dtype) for _ in range(NUM_CHUNKS))
    cost = pl.CostEstimate(
        flops=0, transcendentals=0,
        bytes_accessed=2 * rows * N_IN * x2.dtype.itemsize)
    return pl.pallas_call(
        _split_vec_kernel,
        out_shape=out_shape,
        grid=grid,
        # Last block dims are full-extent (15 in / 5 out) so the (8,128)
        # divisibility rule is satisfied; only the row axis is tiled.
        in_specs=[pl.BlockSpec((tile_rows, N_IN), lambda r: (r, 0))],
        out_specs=tuple(
            pl.BlockSpec((tile_rows, SPLIT), lambda r: (r, 0))
            for _ in range(NUM_CHUNKS)),
        compiler_params=pltpu.CompilerParams(
            dimension_semantics=("parallel",),
            # f32 blocks lane-pad 15->128 / 5->128: 2 KiB/row, double-buffered
            # => 32 MiB at 8192 rows.  Explicit limit so large tiles compile on
            # v5e (16 MiB default scope) and v7x (32 MiB default scope, 64 MiB
            # physical) as well as v6e.
            vmem_limit_bytes=VEC_VMEM_LIMIT),
        cost_estimate=cost,
    )(x2)


# ----------------------------------------------------------------------------
# Path selection + public wrapper.
# ----------------------------------------------------------------------------
_DMA_PATH_OK = None  # tri-state: None = not probed yet, True/False = cached


def _split_rows(x2):
    """Split a (rows, 15) array into three (rows, 5) chunks."""
    global _DMA_PATH_OK
    if _DMA_PATH_OK is None:
        # One-time probe: strided HBM->HBM DMA support can vary across Mosaic
        # builds, so compile/run/verify the fast path once and cache the result.
        try:
            outs = jax.block_until_ready(_split_rows_dma(x2))
            ok = all(
                bool(jnp.array_equal(o, x2[:, c * SPLIT:(c + 1) * SPLIT]))
                for c, o in enumerate(outs))
            _DMA_PATH_OK = ok
            if ok:
                return outs
        except Exception:
            _DMA_PATH_OK = False
    if _DMA_PATH_OK:
        return _split_rows_dma(x2)
    return _split_rows_vec(x2)


def split_pallas(x):
    """q, k, v = torch.split(x, 5, dim=-1) for rank-3 x with last dim 15."""
    B, M, n = x.shape
    assert n == N_IN, f"expected last dim {N_IN}, got {n}"
    # Flatten (B, M) -> rows: free for a contiguous array, makes per-step bytes
    # independent of the B/M distribution and removes the size-1 leading dim.
    x2 = x.reshape(B * M, N_IN)
    q2, k2, v2 = _split_rows(x2)
    return (q2.reshape(B, M, SPLIT),
            k2.reshape(B, M, SPLIT),
            v2.reshape(B, M, SPLIT))


if __name__ == "__main__":
    key = jax.random.PRNGKey(0)

    # Small shape consistent with the module: rank-3 f32, last dim 15.
    x = jax.random.normal(key, (2, 4, 15), dtype=jnp.float32)
    q, k, v = split_pallas(x)
    jax.block_until_ready((q, k, v))
    assert q.shape == (2, 4, 5) and k.shape == (2, 4, 5) and v.shape == (2, 4, 5)
    assert jnp.array_equal(q, x[..., 0:5])
    assert jnp.array_equal(k, x[..., 5:10])
    assert jnp.array_equal(v, x[..., 10:15])

    # Slightly larger, ragged row count to exercise the multi-tile paths
    # (DMA-path clamped overlap / vector-path edge masking).
    x_big = jax.random.normal(jax.random.PRNGKey(1), (2, 10000, 15),
                              dtype=jnp.float32)
    qb, kb, vb = split_pallas(x_big)
    jax.block_until_ready((qb, kb, vb))
    assert jnp.array_equal(qb, x_big[..., 0:5])
    assert jnp.array_equal(kb, x_big[..., 5:10])
    assert jnp.array_equal(vb, x_big[..., 10:15])

    print("KERNEL_OK")
</pallas_src>

<mosaic_0001>
module attributes {stable_mosaic.version = 11 : i64} {
  func.func @_split_dma_kernel(%arg0: i32, %arg1: memref<8x15xf32, #tpu.memory_space<any>>, %arg2: memref<8x5xf32, #tpu.memory_space<any>>, %arg3: memref<8x5xf32, #tpu.memory_space<any>>, %arg4: memref<8x5xf32, #tpu.memory_space<any>>, %arg5: memref<3x!tpu.dma_semaphore, #tpu.memory_space<semaphore_mem>>) attributes {dimension_semantics = [#tpu.dimension_semantics<arbitrary>], iteration_bounds = array<i64: 1>, scalar_prefetch = 0 : i64, scratch_operands = 1 : i64, tpu.core_type = #tpu.core_type<tc>, window_params = [{}, {}, {}, {}]} {
    %c8_i32 = arith.constant 8 : i32
    %0 = arith.muli %arg0, %c8_i32 : i32
    %c0_i32 = arith.constant 0 : i32
    %1 = arith.minsi %0, %c0_i32 : i32
    %c0_i32_0 = arith.constant 0 : i32
    %c0_i32_1 = arith.constant 0 : i32
    %2 = tpu.memref_slice %arg1[%1, %c0_i32_1] : memref<8x15xf32, #tpu.memory_space<any>> -> memref<8x5xf32, #tpu.memory_space<any>>
    %c0_i32_2 = arith.constant 0 : i32
    %3 = tpu.memref_slice %arg2[%1, %c0_i32_2] : memref<8x5xf32, #tpu.memory_space<any>> -> memref<8x5xf32, #tpu.memory_space<any>>
    %4 = tpu.memref_slice %arg5[%c0_i32_0] : memref<3x!tpu.dma_semaphore, #tpu.memory_space<semaphore_mem>> -> memref<1x!tpu.dma_semaphore, #tpu.memory_space<semaphore_mem>>
    %5 = tpu.memref_squeeze %4 : memref<1x!tpu.dma_semaphore, #tpu.memory_space<semaphore_mem>> -> memref<!tpu.dma_semaphore, #tpu.memory_space<semaphore_mem>>
    tpu.enqueue_dma source(%2 : memref<8x5xf32, #tpu.memory_space<any>>) target(%3 : memref<8x5xf32, #tpu.memory_space<any>>) target_semaphore(%5 : memref<!tpu.dma_semaphore, #tpu.memory_space<semaphore_mem>>)
    %c1_i32 = arith.constant 1 : i32
    %c5_i32 = arith.constant 5 : i32
    %6 = tpu.memref_slice %arg1[%1, %c5_i32] : memref<8x15xf32, #tpu.memory_space<any>> -> memref<8x5xf32, #tpu.memory_space<any>>
    %c0_i32_3 = arith.constant 0 : i32
    %7 = tpu.memref_slice %arg3[%1, %c0_i32_3] : memref<8x5xf32, #tpu.memory_space<any>> -> memref<8x5xf32, #tpu.memory_space<any>>
    %8 = tpu.memref_slice %arg5[%c1_i32] : memref<3x!tpu.dma_semaphore, #tpu.memory_space<semaphore_mem>> -> memref<1x!tpu.dma_semaphore, #tpu.memory_space<semaphore_mem>>
    %9 = tpu.memref_squeeze %8 : memref<1x!tpu.dma_semaphore, #tpu.memory_space<semaphore_mem>> -> memref<!tpu.dma_semaphore, #tpu.memory_space<semaphore_mem>>
    tpu.enqueue_dma source(%6 : memref<8x5xf32, #tpu.memory_space<any>>) target(%7 : memref<8x5xf32, #tpu.memory_space<any>>) target_semaphore(%9 : memref<!tpu.dma_semaphore, #tpu.memory_space<semaphore_mem>>)
    %c2_i32 = arith.constant 2 : i32
    %c10_i32 = arith.constant 10 : i32
    %10 = tpu.memref_slice %arg1[%1, %c10_i32] : memref<8x15xf32, #tpu.memory_space<any>> -> memref<8x5xf32, #tpu.memory_space<any>>
    %c0_i32_4 = arith.constant 0 : i32
    %11 = tpu.memref_slice %arg4[%1, %c0_i32_4] : memref<8x5xf32, #tpu.memory_space<any>> -> memref<8x5xf32, #tpu.memory_space<any>>
    %12 = tpu.memref_slice %arg5[%c2_i32] : memref<3x!tpu.dma_semaphore, #tpu.memory_space<semaphore_mem>> -> memref<1x!tpu.dma_semaphore, #tpu.memory_space<semaphore_mem>>
    %13 = tpu.memref_squeeze %12 : memref<1x!tpu.dma_semaphore, #tpu.memory_space<semaphore_mem>> -> memref<!tpu.dma_semaphore, #tpu.memory_space<semaphore_mem>>
    tpu.enqueue_dma source(%10 : memref<8x5xf32, #tpu.memory_space<any>>) target(%11 : memref<8x5xf32, #tpu.memory_space<any>>) target_semaphore(%13 : memref<!tpu.dma_semaphore, #tpu.memory_space<semaphore_mem>>)
    %c0_i32_5 = arith.constant 0 : i32
    %c0_i32_6 = arith.constant 0 : i32
    %14 = tpu.memref_slice %arg1[%1, %c0_i32_6] : memref<8x15xf32, #tpu.memory_space<any>> -> memref<8x5xf32, #tpu.memory_space<any>>
    %c0_i32_7 = arith.constant 0 : i32
    %15 = tpu.memref_slice %arg2[%1, %c0_i32_7] : memref<8x5xf32, #tpu.memory_space<any>> -> memref<8x5xf32, #tpu.memory_space<any>>
    %16 = tpu.memref_slice %arg5[%c0_i32_5] : memref<3x!tpu.dma_semaphore, #tpu.memory_space<semaphore_mem>> -> memref<1x!tpu.dma_semaphore, #tpu.memory_space<semaphore_mem>>
    %17 = tpu.memref_squeeze %16 : memref<1x!tpu.dma_semaphore, #tpu.memory_space<semaphore_mem>> -> memref<!tpu.dma_semaphore, #tpu.memory_space<semaphore_mem>>
    tpu.wait_dma2 semaphore(%17 : memref<!tpu.dma_semaphore, #tpu.memory_space<semaphore_mem>>) src(%14 : memref<8x5xf32, #tpu.memory_space<any>>) dst(%15 : memref<8x5xf32, #tpu.memory_space<any>>)
    %c1_i32_8 = arith.constant 1 : i32
    %c5_i32_9 = arith.constant 5 : i32
    %18 = tpu.memref_slice %arg1[%1, %c5_i32_9] : memref<8x15xf32, #tpu.memory_space<any>> -> memref<8x5xf32, #tpu.memory_space<any>>
    %c0_i32_10 = arith.constant 0 : i32
    %19 = tpu.memref_slice %arg3[%1, %c0_i32_10] : memref<8x5xf32, #tpu.memory_space<any>> -> memref<8x5xf32, #tpu.memory_space<any>>
    %20 = tpu.memref_slice %arg5[%c1_i32_8] : memref<3x!tpu.dma_semaphore, #tpu.memory_space<semaphore_mem>> -> memref<1x!tpu.dma_semaphore, #tpu.memory_space<semaphore_mem>>
    %21 = tpu.memref_squeeze %20 : memref<1x!tpu.dma_semaphore, #tpu.memory_space<semaphore_mem>> -> memref<!tpu.dma_semaphore, #tpu.memory_space<semaphore_mem>>
    tpu.wait_dma2 semaphore(%21 : memref<!tpu.dma_semaphore, #tpu.memory_space<semaphore_mem>>) src(%18 : memref<8x5xf32, #tpu.memory_space<any>>) dst(%19 : memref<8x5xf32, #tpu.memory_space<any>>)
    %c2_i32_11 = arith.constant 2 : i32
    %c10_i32_12 = arith.constant 10 : i32
    %22 = tpu.memref_slice %arg1[%1, %c10_i32_12] : memref<8x15xf32, #tpu.memory_space<any>> -> memref<8x5xf32, #tpu.memory_space<any>>
    %c0_i32_13 = arith.constant 0 : i32
    %23 = tpu.memref_slice %arg4[%1, %c0_i32_13] : memref<8x5xf32, #tpu.memory_space<any>> -> memref<8x5xf32, #tpu.memory_space<any>>
    %24 = tpu.memref_slice %arg5[%c2_i32_11] : memref<3x!tpu.dma_semaphore, #tpu.memory_space<semaphore_mem>> -> memref<1x!tpu.dma_semaphore, #tpu.memory_space<semaphore_mem>>
    %25 = tpu.memref_squeeze %24 : memref<1x!tpu.dma_semaphore, #tpu.memory_space<semaphore_mem>> -> memref<!tpu.dma_semaphore, #tpu.memory_space<semaphore_mem>>
    tpu.wait_dma2 semaphore(%25 : memref<!tpu.dma_semaphore, #tpu.memory_space<semaphore_mem>>) src(%22 : memref<8x5xf32, #tpu.memory_space<any>>) dst(%23 : memref<8x5xf32, #tpu.memory_space<any>>)
    return
  }
}

module attributes {stable_mosaic.version = 11 : i64} {
  func.func @_split_vec_kernel(%arg0: i32, %arg1: memref<8x15xf32, #tpu.memory_space<vmem>>, %arg2: memref<8x5xf32, #tpu.memory_space<vmem>>, %arg3: memref<8x5xf32, #tpu.memory_space<vmem>>, %arg4: memref<8x5xf32, #tpu.memory_space<vmem>>) attributes {dimension_semantics = [#tpu.dimension_semantics<parallel>], iteration_bounds = array<i64: 1>, scalar_prefetch = 0 : i64, scratch_operands = 0 : i64, tpu.core_type = #tpu.core_type<tc>, window_params = [{transform_indices = @transform_0, window_bounds = array<i64: 8, 15>}, {transform_indices = @transform_1, window_bounds = array<i64: 8, 5>}, {transform_indices = @transform_2, window_bounds = array<i64: 8, 5>}, {transform_indices = @transform_3, window_bounds = array<i64: 8, 5>}]} {
    %c0 = arith.constant 0 : index
    %c0_0 = arith.constant 0 : index
    %0 = vector.load %arg1[%c0, %c0_0] : memref<8x15xf32, #tpu.memory_space<vmem>>, vector<8x15xf32>
    %1 = vector.extract_strided_slice %0 {offsets = [0, 0], sizes = [8, 5], strides = [1, 1]} : vector<8x15xf32> to vector<8x5xf32>
    %c0_1 = arith.constant 0 : index
    %c0_2 = arith.constant 0 : index
    %2 = vector.load %arg2[%c0_1, %c0_2] : memref<8x5xf32, #tpu.memory_space<vmem>>, vector<8x5xf32>
    tpu.vector_store %arg2[%c0_1, %c0_2], %1 {strides = array<i32>} : memref<8x5xf32, #tpu.memory_space<vmem>>, vector<8x5xf32>,
    %3 = vector.extract_strided_slice %0 {offsets = [0, 5], sizes = [8, 5], strides = [1, 1]} : vector<8x15xf32> to vector<8x5xf32>
    %c0_3 = arith.constant 0 : index
    %c0_4 = arith.constant 0 : index
    %4 = vector.load %arg3[%c0_3, %c0_4] : memref<8x5xf32, #tpu.memory_space<vmem>>, vector<8x5xf32>
    tpu.vector_store %arg3[%c0_3, %c0_4], %3 {strides = array<i32>} : memref<8x5xf32, #tpu.memory_space<vmem>>, vector<8x5xf32>,
    %5 = vector.extract_strided_slice %0 {offsets = [0, 10], sizes = [8, 5], strides = [1, 1]} : vector<8x15xf32> to vector<8x5xf32>
    %c0_5 = arith.constant 0 : index
    %c0_6 = arith.constant 0 : index
    %6 = vector.load %arg4[%c0_5, %c0_6] : memref<8x5xf32, #tpu.memory_space<vmem>>, vector<8x5xf32>
    tpu.vector_store %arg4[%c0_5, %c0_6], %5 {strides = array<i32>} : memref<8x5xf32, #tpu.memory_space<vmem>>, vector<8x5xf32>,
    return
  }
  func.func @transform_0(%arg0: i32) -> (i32, i32) {
    %c0_i32 = arith.constant 0 : i32
    %c0_i32_0 = arith.constant 0 : i32
    return %arg0, %c0_i32 : i32, i32
  }
  func.func @transform_1(%arg0: i32) -> (i32, i32) {
    %c0_i32 = arith.constant 0 : i32
    %c0_i32_0 = arith.constant 0 : i32
    return %arg0, %c0_i32 : i32, i32
  }
  func.func @transform_2(%arg0: i32) -> (i32, i32) {
    %c0_i32 = arith.constant 0 : i32
    %c0_i32_0 = arith.constant 0 : i32
    return %arg0, %c0_i32 : i32, i32
  }
  func.func @transform_3(%arg0: i32) -> (i32, i32) {
    %c0_i32 = arith.constant 0 : i32
    %c0_i32_0 = arith.constant 0 : i32
    return %arg0, %c0_i32 : i32, i32
  }
}

</mosaic_0001>

<llo_original>
// kernel: tpu_custom_call.1
$region0: #{tpu_custom_call.1}
  #allocation0 [shape = 'u32[]', space=smem, size = 0x4, offset = 0x4, fixed_abs, tag = 'smem constant byte address 0x4 - core index']
  #allocation1 [shape = 'u32[144,128]{1,0:T(1,128)}', space=vmem, size = 0x12000, scoped, tag = 'internal scratch']
  %s0 = inlined_call_operand.hbm [shape: f32[8,15], index: 0, kind: input, shape index: {}]
  %s1 = inlined_call_operand.hbm [shape: f32[8,5], index: 1, kind: output, shape index: {0}]
  %s2 = inlined_call_operand.hbm [shape: f32[8,5], index: 2, kind: output, shape index: {1}]
  %s3 = inlined_call_operand.hbm [shape: f32[8,5], index: 3, kind: output, shape index: {2}]
  %4 = xla_tuple %s1, %s2, %s3
  %s5 = sld [smem:[#allocation0]]
  $region34: #{tpu_custom_call.1} parent=0
    _
  %s7 = ssub.s32 1, %s5
  %s8 = scalar_select 0, %s7, %s5
  $region1: #{tpu_custom_call.1} parent=0
    #allocation2 [shape = 'u8[4096]{0}', space=vmem, size = 0x1000, scoped, tag = 'input window, operand 0, single buffered']
    #allocation3 [shape = 's32[1]{0}', space=sflag, size = 0x4, scoped, tag = 'scoped memory for tpu_custom_call.1']
    #allocation4 [shape = 's32[1]{0}', space=sflag, size = 0x4, scoped, tag = 'scoped memory for tpu_custom_call.1']
    #allocation5 [shape = 'u8[4096]{0}', space=vmem, size = 0x1000, scoped, tag = 'output window, operand 0, single buffered']
    #allocation6 [shape = 'u8[4096]{0}', space=vmem, size = 0x1000, scoped, tag = 'output window, operand 1, single buffered']
    #allocation7 [shape = 's32[1]{0}', space=sflag, size = 0x4, scoped, tag = 'scoped memory for tpu_custom_call.1']
    #allocation8 [shape = 'u8[4096]{0}', space=vmem, size = 0x1000, scoped, tag = 'output window, operand 2, single buffered']
    %9 = vsyncpa [#allocation3], 0
    %10 = vsyncpa [#allocation4], 0
    %11 = vsyncpa [#allocation7], 0
    // Predicated region
    $region2: #{tpu_custom_call.1} parent=1 // pred_check
      _
    $region3: #{tpu_custom_call.1} parent=1 // pred_check_branch
      %13 = sbr.rel (0) target = $region5
    $region4: #{tpu_custom_call.1} parent=1 // pred_region
      %s15 = ssub.s32 128, 128
      %16 = vsyncadd [#allocation3], %s15
      %s18 = sshll.u32 [#allocation2], 4
      %s19 = int_to_ptr.vmem [resolvable:$true] %s18
      %21 = dma.hbm_to_vmem [thread:$0]  %s0, 128, %s19, [#allocation3]
    $region5: #{tpu_custom_call.1} parent=1 // pred_fallthru
      _
    // Predicated region
    $region6: #{tpu_custom_call.1} parent=1 // pred_check
      _
    $region7: #{tpu_custom_call.1} parent=1 // pred_check_branch
      %23 = sbr.rel (0) target = $region9
    $region8: #{tpu_custom_call.1} parent=1 // pred_region
      %24 = dma.done [#allocation3], 128
    $region9: #{tpu_custom_call.1} parent=1 // pred_fallthru
      _
    %v25 = vld [vmem:[#allocation2] sm:$0xff]
    %vm26 = vcmask 39936
    %27 = vst.msk [vmem:[#allocation5] sm:$0xff] %vm26, %v25
    %29 = vrot.lane.b32.xlu0 %v25, 123
    %v30 = vpop.permute.xlu0 %29
    %32 = vst.msk [vmem:[#allocation6] sm:$0xff] %vm26, %v30
    %33 = vrot.lane.b32.xlu0 %v25, 118
    %v34 = vpop.permute.xlu0 %33
    %36 = vst.msk [vmem:[#allocation8] sm:$0xff] %vm26, %v34
    // Predicated region
    $region10: #{tpu_custom_call.1} parent=1 // pred_check
      _
    $region11: #{tpu_custom_call.1} parent=1 // pred_check_branch
      %38 = sbr.rel (0) target = $region13
    $region12: #{tpu_custom_call.1} parent=1 // pred_region
      %s40 = ssub.s32 128, 128
      %41 = vsyncadd [#allocation4], %s40
      %s43 = sshll.u32 [#allocation5], 4
      %s44 = int_to_ptr.vmem [resolvable:$true] %s43
      %46 = dma.vmem_to_hbm [thread:$0]  %s44, 128, %s1, [#allocation4]
    $region13: #{tpu_custom_call.1} parent=1 // pred_fallthru
      _
    // Predicated region
    $region14: #{tpu_custom_call.1} parent=1 // pred_check
      _
    $region15: #{tpu_custom_call.1} parent=1 // pred_check_branch
      %48 = sbr.rel (0) target = $region17
    $region16: #{tpu_custom_call.1} parent=1 // pred_region
      %s50 = ssub.s32 128, 128
      %51 = vsyncadd [#allocation7], %s50
      %s53 = sshll.u32 [#allocation6], 4
      %s54 = int_to_ptr.vmem [resolvable:$true] %s53
      %56 = dma.vmem_to_hbm [thread:$0]  %s54, 128, %s2, [#allocation7]
    $region17: #{tpu_custom_call.1} parent=1 // pred_fallthru
      _
    // Predicated region
    $region18: #{tpu_custom_call.1} parent=1 // pred_check
      _
    $region19: #{tpu_custom_call.1} parent=1 // pred_check_branch
      %58 = sbr.rel (0) target = $region21
    $region20: #{tpu_custom_call.1} parent=1 // pred_region
      %s60 = ssub.s32 128, 128
      %61 = vsyncadd [#allocation7], %s60
      %s63 = sshll.u32 [#allocation8], 4
      %s64 = int_to_ptr.vmem [resolvable:$true] %s63
      %66 = dma.vmem_to_hbm [thread:$0]  %s64, 128, %s3, [#allocation7]
    $region21: #{tpu_custom_call.1} parent=1 // pred_fallthru
      _
    // Predicated region
    $region22: #{tpu_custom_call.1} parent=1 // pred_check
      _
    $region23: #{tpu_custom_call.1} parent=1 // pred_check_branch
      %68 = sbr.rel (0) target = $region25
    $region24: #{tpu_custom_call.1} parent=1 // pred_region
      %69 = dma.done [#allocation4], 128
    $region25: #{tpu_custom_call.1} parent=1 // pred_fallthru
      _
    // Predicated region
    $region26: #{tpu_custom_call.1} parent=1 // pred_check
      _
    $region27: #{tpu_custom_call.1} parent=1 // pred_check_branch
      %71 = sbr.rel (0) target = $region29
    $region28: #{tpu_custom_call.1} parent=1 // pred_region
      %72 = dma.done [#allocation7], 128
    $region29: #{tpu_custom_call.1} parent=1 // pred_fallthru
      _
    // Predicated region
    $region30: #{tpu_custom_call.1} parent=1 // pred_check
      _
    $region31: #{tpu_custom_call.1} parent=1 // pred_check_branch
      %74 = sbr.rel (0) target = $region33
    $region32: #{tpu_custom_call.1} parent=1 // pred_region
      %75 = dma.done [#allocation7], 128
    $region33: #{tpu_custom_call.1} parent=1 // pred_fallthru
      _
    %76 = vsyncpa [#allocation3], 1
    %77 = vsyncpa [#allocation4], 1
    %78 = vsyncpa [#allocation7], 1

</llo_original>
